<compile_context>
chip_gen: v6e
topology: v6e:2x2x1
jax: 0.10.0
libtpu: 0.0.40
codegen_flags: <defaults>
</compile_context>

<pallas_src>
import jax
import jax.numpy as jnp
from jax.experimental import pallas as pl
from jax.experimental.pallas import tpu as pltpu

BN_EPS = 1e-5
HIDDEN = 64
OUT_LANES = 128            # lane-dense predictor output; real logit is column 0


# ------------------------------ kernels ------------------------------------


def fused_kernel(adj_ref, inv_deg_ref, xl_ref, xr_ref, w2cat_ref, b2cat_ref,
                 wp_ref, bp_ref, out_ref):
    """Whole forward pass for graphs whose adjacency fits VMEM (grid=(1,))."""
    adj = adj_ref[...].astype(jnp.bfloat16)            # 0/1 counts -> bf16 (VPU)
    inv_deg = inv_deg_ref[...]                          # (N,1) f32 exact mean scale
    # ---- SAGEConv(4,64) + folded BN1 + ReLU (dropout: eval identity) ----
    agg1 = jnp.dot(adj, xl_ref[...], preferred_element_type=jnp.float32)
    h = jnp.maximum(agg1 * inv_deg + xr_ref[...], 0.0)
    # ---- SAGEConv(64,64): one 128-wide matmul against concat(W2l | W2r) ----
    hh = jnp.dot(h.astype(jnp.bfloat16), w2cat_ref[...],
                 preferred_element_type=jnp.float32) + b2cat_ref[...]
    hid = xl_ref.shape[-1]
    hl = hh[:, :hid].astype(jnp.bfloat16)               # branch to be aggregated
    hr = hh[:, hid:]                                    # root branch (+ folded b2)
    agg2 = jnp.dot(adj, hl, preferred_element_type=jnp.float32)
    h2 = jnp.maximum(agg2 * inv_deg + hr, 0.0)
    # ---- predictor Linear(64,1) (lane-padded to 128) + sigmoid ----
    logits = jnp.dot(h2, wp_ref[...], preferred_element_type=jnp.float32) + bp_ref[...]
    out_ref[...] = jax.nn.sigmoid(logits)


def layer1_kernel(adj_ref, inv_deg_ref, xl_ref, xr_ref, w2cat_ref, b2cat_ref,
                  hl_ref, hr_ref):
    """SAGEConv(4,64)+BN1+ReLU, plus both layer-2 input branches (bf16 out)."""
    agg = jnp.dot(adj_ref[...].astype(jnp.bfloat16), xl_ref[...],
                  preferred_element_type=jnp.float32)
    h = jnp.maximum(agg * inv_deg_ref[...] + xr_ref[...], 0.0)
    hh = jnp.dot(h.astype(jnp.bfloat16), w2cat_ref[...],
                 preferred_element_type=jnp.float32) + b2cat_ref[...]
    hid = hl_ref.shape[-1]
    hl_ref[...] = hh[:, :hid].astype(hl_ref.dtype)
    hr_ref[...] = hh[:, hid:].astype(hr_ref.dtype)


def layer2_kernel(adj_ref, inv_deg_ref, hl_ref, hr_ref, wp_ref, bp_ref, out_ref):
    """SAGEConv(64,64)+BN2+ReLU + predictor Linear + sigmoid."""
    agg = jnp.dot(adj_ref[...].astype(jnp.bfloat16), hl_ref[...],
                  preferred_element_type=jnp.float32)
    h2 = jnp.maximum(agg * inv_deg_ref[...] + hr_ref[...].astype(jnp.float32), 0.0)
    logits = jnp.dot(h2, wp_ref[...], preferred_element_type=jnp.float32) + bp_ref[...]
    out_ref[...] = jax.nn.sigmoid(logits)


# ------------------------------ graph prep ----------------------------------


def build_adjacency(edge_index, num_nodes):
    """Dense edge-count matrix (small exact ints in f32) and exact 1/deg column.

    Matches PyG SAGEConv aggr='mean' (scatter_mean over the given edges,
    including duplicates / self-loops if present; the root term uses a separate
    weight).  Counts are later stored as int8 (assumes < 128 parallel edges).
    """
    src = edge_index[0]
    dst = edge_index[1]
    deg = jnp.zeros((num_nodes,), jnp.float32).at[dst].add(1.0)
    inv_deg = (1.0 / jnp.maximum(deg, 1.0)).reshape(num_nodes, 1)
    counts = jnp.zeros((num_nodes, num_nodes), jnp.float32).at[dst, src].add(1.0)
    return counts, inv_deg


# ------------------------------ sizing helpers -------------------------------


def _round_up(a, m):
    return ((a + m - 1) // m) * m


def _vmem_budget_bytes():
    """~3/4 of per-core VMEM: ~96 MiB on v5e/v6e (128 MiB), ~48 MiB on v7x (64 MiB/TC)."""
    try:
        cap = int(pltpu.get_tpu_info().vmem_capacity_bytes)
    except Exception:
        cap = 64 << 20                      # conservative (v7x per-TC) fallback
    if cap < (32 << 20):
        cap = 64 << 20
    return (cap * 3) // 4


def _fused_vmem_need(n_pad):
    h, ol = HIDDEN, OUT_LANES
    io = (n_pad * n_pad                      # adj (int8)
          + n_pad * 128 * 4                  # inv_deg (lane-padded worst case)
          + n_pad * h * (2 + 4)              # xl bf16 + xr f32
          + h * 2 * h * 2 + 2 * h * 4        # w2cat bf16 + b2cat f32
          + h * ol * 4 + ol * 4              # wp + bp
          + n_pad * ol * 4)                  # out f32
    tmp = (2 * n_pad * n_pad                 # adj -> bf16 convert temp
           + n_pad * h * (4 + 2 + 2 + 4 + 4) # h, h_bf16, hl, agg2, h2
           + n_pad * 2 * h * 4               # hh
           + n_pad * ol * 4)                 # logits
    return 2 * io + tmp                      # x2: possible double-buffering of blocks


def _two_pass_vmem_need(rb, n_pad):
    h, ol = HIDDEN, OUT_LANES
    k1 = (2 * (rb * n_pad + rb * 128 * 4 + rb * h * 4 + 2 * rb * h * 2)  # pipelined blocks
          + 2 * (n_pad * h * 2 + h * 2 * h * 2 + 2 * h * 4)              # residents
          + 2 * rb * n_pad                                               # adj bf16 temp
          + rb * h * (4 + 2) + rb * 2 * h * 4)                           # h, h_bf16, hh
    k2 = (2 * (rb * n_pad + rb * 128 * 4 + rb * h * 2 + rb * ol * 4)
          + 2 * (n_pad * h * 2 + h * ol * 4 + ol * 4)
          + 2 * rb * n_pad
          + rb * h * (4 + 4) + rb * ol * 4)
    return max(k1, k2) + (2 << 20)           # margin for compiler internal scratch


def _choose_row_block(n, budget):
    n128 = _round_up(max(n, 1), 128)
    for rb in (512, 256, 128, 64, 32):
        if rb > n128:
            continue
        n_pad = _round_up(n, max(128, 2 * rb))    # even #blocks -> balanced v7x TCs
        if _two_pass_vmem_need(rb, n_pad) <= budget:
            return rb, n_pad
    # TODO(synk): K-tile the adjacency columns for dense graphs this large
    # (>~300k nodes); a dense adjacency is impractical well before that.
    return 32, _round_up(n, 128)


# ------------------------------ wrapper -------------------------------------


def bus_stop_predictor(x, edge_index, params, *, force_two_pass=False):
    n = x.shape[0]
    h = HIDDEN

    # ---- fold BatchNorm (eval, running stats) into SAGE weights/biases ----
    s1 = params["g1"] * jax.lax.rsqrt(params["v1"] + BN_EPS)
    w1l = params["w1l"] * s1
    w1r = params["w1r"] * s1
    b1 = params["b1"] * s1 + (params["be1"] - params["m1"] * s1)
    s2 = params["g2"] * jax.lax.rsqrt(params["v2"] + BN_EPS)
    w2l = params["w2l"] * s2
    w2r = params["w2r"] * s2
    b2 = params["b2"] * s2 + (params["be2"] - params["m2"] * s2)

    # layer-2 weights fused into one lane-dense 128-wide matmul:
    # columns [0:64] -> branch that gets aggregated, [64:128] -> root branch (+bias)
    w2cat = jnp.concatenate([w2l, w2r], axis=1).astype(jnp.bfloat16)   # (64, 128)
    b2cat = jnp.concatenate([jnp.zeros_like(b2), b2], axis=1)          # (1, 128)

    # predictor padded to 128 output lanes (real logit in column 0)
    wp_pad = jnp.pad(params["wp"], ((0, 0), (0, OUT_LANES - 1)))
    bp_pad = jnp.pad(params["bp"], ((0, 0), (0, OUT_LANES - 1)))

    budget = _vmem_budget_bytes()
    if (not force_two_pass) and _fused_vmem_need(_round_up(max(n, 1), 128)) <= budget:
        use_fused = True
        n_pad = _round_up(max(n, 1), 128)
    else:
        use_fused = False
        row_block, n_pad = _choose_row_block(n, budget)

    # ---- adjacency (int8 counts) + exact f32 inv_deg + padding ----
    pad = n_pad - n
    counts, inv_deg = build_adjacency(edge_index, n)
    adj_p = jnp.pad(counts, ((0, pad), (0, pad))).astype(jnp.int8)
    inv_deg_p = jnp.pad(inv_deg, ((0, pad), (0, 0)))
    x_p = jnp.pad(x.astype(jnp.float32), ((0, pad), (0, 0)))

    # layer-1 reorder: the tiny (N,4) input projections run in XLA
    xl = (x_p @ w1l).astype(jnp.bfloat16)       # aggregated-branch projection
    xr = x_p @ w1r + b1                         # root branch + folded bias (f32)

    if use_fused:
        # -------- single-pass path: adj read from HBM exactly once ----------
        full = lambda shape: pl.BlockSpec(shape, lambda i: (0, 0))
        out = pl.pallas_call(
            fused_kernel,
            out_shape=jax.ShapeDtypeStruct((n_pad, OUT_LANES), jnp.float32),
            grid=(1,),
            in_specs=[full((n_pad, n_pad)),
                      full((n_pad, 1)),
                      full((n_pad, h)),
                      full((n_pad, h)),
                      full((h, 2 * h)),
                      full((1, 2 * h)),
                      full((h, OUT_LANES)),
                      full((1, OUT_LANES))],
            out_specs=full((n_pad, OUT_LANES)),
            compiler_params=pltpu.CompilerParams(
                dimension_semantics=("arbitrary",),
                vmem_limit_bytes=budget),
        )(adj_p, inv_deg_p, xl, xr, w2cat, b2cat, wp_pad, bp_pad)
        return out[:n, :1]

    # -------- two-pass path: row-block pipelined over the adjacency ---------
    rowblk = lambda shape: pl.BlockSpec(shape, lambda i: (i, 0))
    resident = lambda shape: pl.BlockSpec(shape, lambda i: (0, 0))
    grid = (n_pad // row_block,)
    cparams = pltpu.CompilerParams(dimension_semantics=("parallel",),
                                   vmem_limit_bytes=budget)

    # kernel 1: layer 1 + both layer-2 input branches (bf16 intermediates)
    hl, hr = pl.pallas_call(
        layer1_kernel,
        out_shape=(jax.ShapeDtypeStruct((n_pad, h), jnp.bfloat16),
                   jax.ShapeDtypeStruct((n_pad, h), jnp.bfloat16)),
        grid=grid,
        in_specs=[rowblk((row_block, n_pad)),
                  rowblk((row_block, 1)),
                  resident((n_pad, h)),
                  rowblk((row_block, h)),
                  resident((h, 2 * h)),
                  resident((1, 2 * h))],
        out_specs=(rowblk((row_block, h)), rowblk((row_block, h))),
        compiler_params=cparams,
    )(adj_p, inv_deg_p, xl, xr, w2cat, b2cat)

    # kernel 2: layer 2 + predictor + sigmoid
    out = pl.pallas_call(
        layer2_kernel,
        out_shape=jax.ShapeDtypeStruct((n_pad, OUT_LANES), jnp.float32),
        grid=grid,
        in_specs=[rowblk((row_block, n_pad)),
                  rowblk((row_block, 1)),
                  resident((n_pad, h)),
                  rowblk((row_block, h)),
                  resident((h, OUT_LANES)),
                  resident((1, OUT_LANES))],
        out_specs=rowblk((row_block, OUT_LANES)),
        compiler_params=cparams,
    )(adj_p, inv_deg_p, hl, hr, wp_pad, bp_pad)

    return out[:n, :1]


# ------------------------------ reference & params --------------------------


def reference_forward(x, edge_index, p):
    """Pure-JAX f32 reference with the original (unfolded) math."""
    n = x.shape[0]
    counts, inv_deg = build_adjacency(edge_index, n)
    adj = counts * inv_deg                     # row-normalized mean aggregation
    h = (adj @ x) @ p["w1l"] + x @ p["w1r"] + p["b1"]
    h = p["g1"] * (h - p["m1"]) * jax.lax.rsqrt(p["v1"] + BN_EPS) + p["be1"]
    h = jnp.maximum(h, 0.0)
    h2 = (adj @ h) @ p["w2l"] + h @ p["w2r"] + p["b2"]
    h2 = p["g2"] * (h2 - p["m2"]) * jax.lax.rsqrt(p["v2"] + BN_EPS) + p["be2"]
    h2 = jnp.maximum(h2, 0.0)
    return jax.nn.sigmoid(h2 @ p["wp"] + p["bp"])


def init_params(key, in_feat=4, hidden=64):
    ks = jax.random.split(key, 8)
    p = {}
    # SAGEConv 1 (weights stored transposed: (in, out) so forward is x @ W)
    p["w1l"] = jax.random.normal(ks[0], (in_feat, hidden), jnp.float32) * 0.2
    p["w1r"] = jax.random.normal(ks[1], (in_feat, hidden), jnp.float32) * 0.2
    p["b1"] = jnp.zeros((1, hidden), jnp.float32) + 0.01
    # BatchNorm 1 (eval-mode running stats)
    p["g1"] = jnp.ones((1, hidden), jnp.float32) * 1.1
    p["be1"] = jnp.ones((1, hidden), jnp.float32) * 0.05
    p["m1"] = jax.random.normal(ks[2], (1, hidden), jnp.float32) * 0.1
    p["v1"] = jnp.abs(jax.random.normal(ks[3], (1, hidden), jnp.float32)) * 0.1 + 0.9
    # SAGEConv 2
    p["w2l"] = jax.random.normal(ks[4], (hidden, hidden), jnp.float32) * 0.1
    p["w2r"] = jax.random.normal(ks[5], (hidden, hidden), jnp.float32) * 0.1
    p["b2"] = jnp.zeros((1, hidden), jnp.float32) + 0.01
    # BatchNorm 2
    p["g2"] = jnp.ones((1, hidden), jnp.float32) * 0.9
    p["be2"] = jnp.ones((1, hidden), jnp.float32) * -0.05
    p["m2"] = jax.random.normal(ks[6], (1, hidden), jnp.float32) * 0.1
    p["v2"] = jnp.abs(jax.random.normal(ks[7], (1, hidden), jnp.float32)) * 0.1 + 0.9
    # predictor Linear(64, 1)
    p["wp"] = jax.random.normal(jax.random.fold_in(key, 99), (hidden, 1), jnp.float32) * 0.1
    p["bp"] = jnp.zeros((1, 1), jnp.float32) + 0.02
    return p


if __name__ == "__main__":
    key = jax.random.PRNGKey(0)
    k_x, k_src, k_dst, k_p = jax.random.split(key, 4)

    num_nodes = 16
    num_edges = 48
    x = jax.random.normal(k_x, (num_nodes, 4), jnp.float32)
    edge_index = jnp.stack([
        jax.random.randint(k_src, (num_edges,), 0, num_nodes, dtype=jnp.int32),
        jax.random.randint(k_dst, (num_edges,), 0, num_nodes, dtype=jnp.int32),
    ])  # (2, E), row 0 = source, row 1 = target

    params = init_params(k_p)

    predict_fused = jax.jit(lambda xx, ee: bus_stop_predictor(xx, ee, params))
    predict_tiled = jax.jit(
        lambda xx, ee: bus_stop_predictor(xx, ee, params, force_two_pass=True))

    out_fused = jax.block_until_ready(predict_fused(x, edge_index))
    out_tiled = jax.block_until_ready(predict_tiled(x, edge_index))
    ref = jax.block_until_ready(reference_forward(x, edge_index, params))

    for out in (out_fused, out_tiled):
        assert out.shape == (num_nodes, 1)
        assert bool(jnp.all(jnp.isfinite(out)))
        assert bool(jnp.all((out >= 0.0) & (out <= 1.0)))
        # adjacency + mean normalization are exact now; residual error is bf16 activations.
        assert bool(jnp.max(jnp.abs(out - ref)) < 2e-2)
    print("KERNEL_OK")
</pallas_src>

<mosaic_0001>
module attributes {stable_mosaic.version = 11 : i64} {
  func.func private @main(%arg0: i32) attributes {dimension_semantics = [#tpu.dimension_semantics<core_parallel>], iteration_bounds = array<i64: 2>, tpu.core_type = #tpu.core_type<sc_scalar_subcore>, window_params = []} {
    return
  }
}

module attributes {stable_mosaic.version = 11 : i64} {
  func.func private @main(%arg0: i32) attributes {dimension_semantics = [#tpu.dimension_semantics<core_parallel>], iteration_bounds = array<i64: 2>, tpu.core_type = #tpu.core_type<sc_scalar_subcore>, window_params = []} {
    return
  }
}

module attributes {stable_mosaic.version = 11 : i64} {
  func.func @fused_kernel(%arg0: i32, %arg1: memref<128x128xi8, #tpu.memory_space<vmem>>, %arg2: memref<128x1xf32, #tpu.memory_space<vmem>>, %arg3: memref<128x64xbf16, #tpu.memory_space<vmem>>, %arg4: memref<128x64xf32, #tpu.memory_space<vmem>>, %arg5: memref<64x128xbf16, #tpu.memory_space<vmem>>, %arg6: memref<1x128xf32, #tpu.memory_space<vmem>>, %arg7: memref<64x128xf32, #tpu.memory_space<vmem>>, %arg8: memref<1x128xf32, #tpu.memory_space<vmem>>, %arg9: memref<128x128xf32, #tpu.memory_space<vmem>>) attributes {dimension_semantics = [#tpu.dimension_semantics<arbitrary>], iteration_bounds = array<i64: 1>, scalar_prefetch = 0 : i64, scratch_operands = 0 : i64, tpu.core_type = #tpu.core_type<tc>, window_params = [{pipeline_mode = #tpu.pipeline_mode<synchronous>, transform_indices = @transform_0, window_bounds = array<i64: 128, 128>}, {pipeline_mode = #tpu.pipeline_mode<synchronous>, transform_indices = @transform_1, window_bounds = array<i64: 128, 1>}, {pipeline_mode = #tpu.pipeline_mode<synchronous>, transform_indices = @transform_2, window_bounds = array<i64: 128, 64>}, {pipeline_mode = #tpu.pipeline_mode<synchronous>, transform_indices = @transform_3, window_bounds = array<i64: 128, 64>}, {pipeline_mode = #tpu.pipeline_mode<synchronous>, transform_indices = @transform_4, window_bounds = array<i64: 64, 128>}, {pipeline_mode = #tpu.pipeline_mode<synchronous>, transform_indices = @transform_5, window_bounds = array<i64: 1, 128>}, {pipeline_mode = #tpu.pipeline_mode<synchronous>, transform_indices = @transform_6, window_bounds = array<i64: 64, 128>}, {pipeline_mode = #tpu.pipeline_mode<synchronous>, transform_indices = @transform_7, window_bounds = array<i64: 1, 128>}, {pipeline_mode = #tpu.pipeline_mode<synchronous>, transform_indices = @transform_8, window_bounds = array<i64: 128, 128>}]} {
    %c0 = arith.constant 0 : index
    %c0_0 = arith.constant 0 : index
    %0 = vector.load %arg1[%c0, %c0_0] : memref<128x128xi8, #tpu.memory_space<vmem>>, vector<128x128xi8>
    %1 = arith.sitofp %0 : vector<128x128xi8> to vector<128x128xbf16>
    %c0_1 = arith.constant 0 : index
    %c0_2 = arith.constant 0 : index
    %2 = vector.load %arg2[%c0_1, %c0_2] : memref<128x1xf32, #tpu.memory_space<vmem>>, vector<128x1xf32>
    %c0_3 = arith.constant 0 : index
    %c0_4 = arith.constant 0 : index
    %3 = vector.load %arg3[%c0_3, %c0_4] : memref<128x64xbf16, #tpu.memory_space<vmem>>, vector<128x64xbf16>
    %cst = arith.constant dense<0.000000e+00> : vector<128x64xf32>
    %4 = tpu.matmul %1, %3, %cst {dimension_numbers = #tpu.dot_dimension_numbers<[1], [0], [0], [1], [0, 0, 1, 1], [], []>} : vector<128x128xbf16>, vector<128x64xbf16>, vector<128x64xf32> -> vector<128x64xf32>
    %5 = vector.broadcast %2 : vector<128x1xf32> to vector<128x64xf32>
    %6 = arith.mulf %4, %5 : vector<128x64xf32>
    %c0_5 = arith.constant 0 : index
    %c0_6 = arith.constant 0 : index
    %7 = vector.load %arg4[%c0_5, %c0_6] : memref<128x64xf32, #tpu.memory_space<vmem>>, vector<128x64xf32>
    %8 = arith.addf %6, %7 : vector<128x64xf32>
    %cst_7 = arith.constant 0.000000e+00 : f32
    %9 = vector.broadcast %cst_7 : f32 to vector<128x64xf32>
    %10 = arith.maximumf %8, %9 : vector<128x64xf32>
    %11 = arith.truncf %10 : vector<128x64xf32> to vector<128x64xbf16>
    %c0_8 = arith.constant 0 : index
    %c0_9 = arith.constant 0 : index
    %12 = vector.load %arg5[%c0_8, %c0_9] : memref<64x128xbf16, #tpu.memory_space<vmem>>, vector<64x128xbf16>
    %cst_10 = arith.constant dense<0.000000e+00> : vector<128x128xf32>
    %13 = tpu.matmul %11, %12, %cst_10 {dimension_numbers = #tpu.dot_dimension_numbers<[1], [0], [0], [1], [0, 0, 1, 1], [], []>} : vector<128x64xbf16>, vector<64x128xbf16>, vector<128x128xf32> -> vector<128x128xf32>
    %c0_11 = arith.constant 0 : index
    %c0_12 = arith.constant 0 : index
    %14 = vector.load %arg6[%c0_11, %c0_12] : memref<1x128xf32, #tpu.memory_space<vmem>>, vector<1x128xf32>
    %15 = vector.broadcast %14 : vector<1x128xf32> to vector<128x128xf32>
    %16 = arith.addf %13, %15 : vector<128x128xf32>
    %17 = vector.extract_strided_slice %16 {offsets = [0, 0], sizes = [128, 64], strides = [1, 1]} : vector<128x128xf32> to vector<128x64xf32>
    %18 = arith.truncf %17 : vector<128x64xf32> to vector<128x64xbf16>
    %19 = vector.extract_strided_slice %16 {offsets = [0, 64], sizes = [128, 64], strides = [1, 1]} : vector<128x128xf32> to vector<128x64xf32>
    %cst_13 = arith.constant dense<0.000000e+00> : vector<128x64xf32>
    %20 = tpu.matmul %1, %18, %cst_13 {dimension_numbers = #tpu.dot_dimension_numbers<[1], [0], [0], [1], [0, 0, 1, 1], [], []>} : vector<128x128xbf16>, vector<128x64xbf16>, vector<128x64xf32> -> vector<128x64xf32>
    %21 = vector.broadcast %2 : vector<128x1xf32> to vector<128x64xf32>
    %22 = arith.mulf %20, %21 : vector<128x64xf32>
    %23 = arith.addf %22, %19 : vector<128x64xf32>
    %cst_14 = arith.constant 0.000000e+00 : f32
    %24 = vector.broadcast %cst_14 : f32 to vector<128x64xf32>
    %25 = arith.maximumf %23, %24 : vector<128x64xf32>
    %c0_15 = arith.constant 0 : index
    %c0_16 = arith.constant 0 : index
    %26 = vector.load %arg7[%c0_15, %c0_16] : memref<64x128xf32, #tpu.memory_space<vmem>>, vector<64x128xf32>
    %cst_17 = arith.constant dense<0.000000e+00> : vector<128x128xf32>
    %27 = tpu.matmul %25, %26, %cst_17 {dimension_numbers = #tpu.dot_dimension_numbers<[1], [0], [0], [1], [0, 0, 1, 1], [], []>} : vector<128x64xf32>, vector<64x128xf32>, vector<128x128xf32> -> vector<128x128xf32>
    %c0_18 = arith.constant 0 : index
    %c0_19 = arith.constant 0 : index
    %28 = vector.load %arg8[%c0_18, %c0_19] : memref<1x128xf32, #tpu.memory_space<vmem>>, vector<1x128xf32>
    %29 = vector.broadcast %28 : vector<1x128xf32> to vector<128x128xf32>
    %30 = arith.addf %27, %29 : vector<128x128xf32>
    %31 = arith.negf %30 : vector<128x128xf32>
    %32 = math.exp %31 : vector<128x128xf32>
    %cst_20 = arith.constant 1.000000e+00 : f32
    %33 = vector.broadcast %cst_20 : f32 to vector<128x128xf32>
    %34 = arith.addf %33, %32 : vector<128x128xf32>
    %35 = arith.divf %33, %34 : vector<128x128xf32>
    %c0_21 = arith.constant 0 : index
    %c0_22 = arith.constant 0 : index
    %36 = vector.load %arg9[%c0_21, %c0_22] : memref<128x128xf32, #tpu.memory_space<vmem>>, vector<128x128xf32>
    tpu.vector_store %arg9[%c0_21, %c0_22], %35 {strides = array<i32>} : memref<128x128xf32, #tpu.memory_space<vmem>>, vector<128x128xf32>,
    return
  }
  func.func @transform_0(%arg0: i32) -> (i32, i32) {
    %c0_i32 = arith.constant 0 : i32
    %c0_i32_0 = arith.constant 0 : i32
    %c0_i32_1 = arith.constant 0 : i32
    return %c0_i32, %c0_i32_0 : i32, i32
  }
  func.func @transform_1(%arg0: i32) -> (i32, i32) {
    %c0_i32 = arith.constant 0 : i32
    %c0_i32_0 = arith.constant 0 : i32
    %c0_i32_1 = arith.constant 0 : i32
    return %c0_i32, %c0_i32_0 : i32, i32
  }
  func.func @transform_2(%arg0: i32) -> (i32, i32) {
    %c0_i32 = arith.constant 0 : i32
    %c0_i32_0 = arith.constant 0 : i32
    %c0_i32_1 = arith.constant 0 : i32
    return %c0_i32, %c0_i32_0 : i32, i32
  }
  func.func @transform_3(%arg0: i32) -> (i32, i32) {
    %c0_i32 = arith.constant 0 : i32
    %c0_i32_0 = arith.constant 0 : i32
    %c0_i32_1 = arith.constant 0 : i32
    return %c0_i32, %c0_i32_0 : i32, i32
  }
  func.func @transform_4(%arg0: i32) -> (i32, i32) {
    %c0_i32 = arith.constant 0 : i32
    %c0_i32_0 = arith.constant 0 : i32
    %c0_i32_1 = arith.constant 0 : i32
    return %c0_i32, %c0_i32_0 : i32, i32
  }
  func.func @transform_5(%arg0: i32) -> (i32, i32) {
    %c0_i32 = arith.constant 0 : i32
    %c0_i32_0 = arith.constant 0 : i32
    %c0_i32_1 = arith.constant 0 : i32
    return %c0_i32, %c0_i32_0 : i32, i32
  }
  func.func @transform_6(%arg0: i32) -> (i32, i32) {
    %c0_i32 = arith.constant 0 : i32
    %c0_i32_0 = arith.constant 0 : i32
    %c0_i32_1 = arith.constant 0 : i32
    return %c0_i32, %c0_i32_0 : i32, i32
  }
  func.func @transform_7(%arg0: i32) -> (i32, i32) {
    %c0_i32 = arith.constant 0 : i32
    %c0_i32_0 = arith.constant 0 : i32
    %c0_i32_1 = arith.constant 0 : i32
    return %c0_i32, %c0_i32_0 : i32, i32
  }
  func.func @transform_8(%arg0: i32) -> (i32, i32) {
    %c0_i32 = arith.constant 0 : i32
    %c0_i32_0 = arith.constant 0 : i32
    %c0_i32_1 = arith.constant 0 : i32
    return %c0_i32, %c0_i32_0 : i32, i32
  }
}

</mosaic_0001>

<llo_original>
// kernel: _lambda_.1
$region0: #{_lambda_.1}
  #allocation0 [shape = 'u32[]', space=smem, size = 0x4, offset = 0x4, fixed_abs, tag = 'smem constant byte address 0x4 - core index']
  #allocation1 [shape = 'u32[144,128]{1,0:T(1,128)}', space=vmem, size = 0x12000, scoped, tag = 'internal scratch']
  %s0 = inlined_call_operand.vmem [shape: s8[128,128], index: 0, kind: input, shape index: {}]
  %s1 = inlined_call_operand.vmem [shape: f32[128,1], index: 1, kind: input, shape index: {}]
  %s2 = inlined_call_operand.vmem [shape: bf16[128,64], index: 2, kind: input, shape index: {}]
  %s3 = inlined_call_operand.vmem [shape: f32[128,64], index: 3, kind: input, shape index: {}]
  %s4 = inlined_call_operand.vmem [shape: bf16[64,128], index: 4, kind: input, shape index: {}]
  %s5 = inlined_call_operand.vmem [shape: f32[1,128], index: 5, kind: input, shape index: {}]
  %s6 = inlined_call_operand.vmem [shape: f32[64,128], index: 6, kind: input, shape index: {}]
  %s7 = inlined_call_operand.vmem [shape: f32[1,128], index: 7, kind: input, shape index: {}]
  %s8 = inlined_call_operand.vmem [shape: f32[128,128], index: 8, kind: output, shape index: {}]
  %s9 = sld [smem:[#allocation0]]
  $region42: #{_lambda_.1} parent=0
    _
  %s11 = ssub.s32 1, %s9
  %s12 = scalar_select 0, %s11, %s9
  // Predicated region
  $region2: #{_lambda_.1} parent=0 // pred_check
    _
  $region3: #{_lambda_.1} parent=0 // pred_check_branch
    %14 = sbr.rel (0) target = $region5
  $region4: #{_lambda_.1} parent=0 // pred_region
    _
  $region5: #{_lambda_.1} parent=0 // pred_fallthru
    _
  // Predicated region
  $region6: #{_lambda_.1} parent=0 // pred_check
    _
  $region7: #{_lambda_.1} parent=0 // pred_check_branch
    %16 = sbr.rel (0) target = $region9
  $region8: #{_lambda_.1} parent=0 // pred_region
    _
  $region9: #{_lambda_.1} parent=0 // pred_fallthru
    _
  // Predicated region
  $region10: #{_lambda_.1} parent=0 // pred_check
    _
  $region11: #{_lambda_.1} parent=0 // pred_check_branch
    %18 = sbr.rel (0) target = $region13
  $region12: #{_lambda_.1} parent=0 // pred_region
    _
  $region13: #{_lambda_.1} parent=0 // pred_fallthru
    _
  // Predicated region
  $region14: #{_lambda_.1} parent=0 // pred_check
    _
  $region15: #{_lambda_.1} parent=0 // pred_check_branch
    %20 = sbr.rel (0) target = $region17
  $region16: #{_lambda_.1} parent=0 // pred_region
    _
  $region17: #{_lambda_.1} parent=0 // pred_fallthru
    _
  // Predicated region
  $region18: #{_lambda_.1} parent=0 // pred_check
    _
  $region19: #{_lambda_.1} parent=0 // pred_check_branch
    %22 = sbr.rel (0) target = $region21
  $region20: #{_lambda_.1} parent=0 // pred_region
    _
  $region21: #{_lambda_.1} parent=0 // pred_fallthru
    _
  // Predicated region
  $region22: #{_lambda_.1} parent=0 // pred_check
    _
  $region23: #{_lambda_.1} parent=0 // pred_check_branch
    %24 = sbr.rel (0) target = $region25
  $region24: #{_lambda_.1} parent=0 // pred_region
    _
  $region25: #{_lambda_.1} parent=0 // pred_fallthru
    _
  // Predicated region
  $region26: #{_lambda_.1} parent=0 // pred_check
    _
  $region27: #{_lambda_.1} parent=0 // pred_check_branch
    %26 = sbr.rel (0) target = $region29
  $region28: #{_lambda_.1} parent=0 // pred_region
    _
  $region29: #{_lambda_.1} parent=0 // pred_fallthru
    _
  // Predicated region
  $region30: #{_lambda_.1} parent=0 // pred_check
    _
  $region31: #{_lambda_.1} parent=0 // pred_check_branch
    %28 = sbr.rel (0) target = $region33
  $region32: #{_lambda_.1} parent=0 // pred_region
    _
  $region33: #{_lambda_.1} parent=0 // pred_fallthru
    _
  %v30 = vld [vmem:[%s0] sm:$0xff]
  %v31 = vld [vmem:[%s0 + $0x8] sm:$0xff]
  %v32 = vld [vmem:[%s0 + $0x10] sm:$0xff]
  %v33 = vld [vmem:[%s0 + $0x18] sm:$0xff]
  %v34 = vunpack.c.l.s8.bf16 %v30
  %v35 = vunpack.c.h.s8.bf16 %v30
  %v36 = vunpack.c.l.s8.bf16 %v31
  %v37 = vunpack.c.h.s8.bf16 %v31
  %v38 = vunpack.c.l.s8.bf16 %v32
  %v39 = vunpack.c.h.s8.bf16 %v32
  %v40 = vunpack.c.l.s8.bf16 %v33
  %v41 = vunpack.c.h.s8.bf16 %v33
  %v42 = vld [vmem:[%s1] sm:$0xff]
  %v43 = vld [vmem:[%s1 + $0x8] sm:$0xff]
  %v44 = vld [vmem:[%s1 + $0x10] sm:$0xff]
  %v45 = vld [vmem:[%s1 + $0x18] sm:$0xff]
  %v46 = vld [vmem:[%s1 + $0x20] sm:$0xff]
  %v47 = vld [vmem:[%s1 + $0x28] sm:$0xff]
  %v48 = vld [vmem:[%s1 + $0x30] sm:$0xff]
  %v49 = vld [vmem:[%s1 + $0x38] sm:$0xff]
  %v50 = vld [vmem:[%s1 + $0x40] sm:$0xff]
  %v51 = vld [vmem:[%s1 + $0x48] sm:$0xff]
  %v52 = vld [vmem:[%s1 + $0x50] sm:$0xff]
  %v53 = vld [vmem:[%s1 + $0x58] sm:$0xff]
  %v54 = vld [vmem:[%s1 + $0x60] sm:$0xff]
  %v55 = vld [vmem:[%s1 + $0x68] sm:$0xff]
  %v56 = vld [vmem:[%s1 + $0x70] sm:$0xff]
  %v57 = vld [vmem:[%s1 + $0x78] sm:$0xff]
  %v58 = vld [vmem:[%s2] sm:$0xf]
  %v59 = vld [vmem:[%s2 + $0x4] sm:$0xf]
  %v60 = vld [vmem:[%s2 + $0x8] sm:$0xf]
  %v61 = vld [vmem:[%s2 + $0xc] sm:$0xf]
  %v62 = vld [vmem:[%s2 + $0x10] sm:$0xf]
  %v63 = vld [vmem:[%s2 + $0x14] sm:$0xf]
  %v64 = vld [vmem:[%s2 + $0x18] sm:$0xf]
  %v65 = vld [vmem:[%s2 + $0x1c] sm:$0xf]
  %v66 = vld [vmem:[%s2 + $0x20] sm:$0xf]
  %v67 = vld [vmem:[%s2 + $0x24] sm:$0xf]
  %v68 = vld [vmem:[%s2 + $0x28] sm:$0xf]
  %v69 = vld [vmem:[%s2 + $0x2c] sm:$0xf]
  %v70 = vld [vmem:[%s2 + $0x30] sm:$0xf]
  %v71 = vld [vmem:[%s2 + $0x34] sm:$0xf]
  %v72 = vld [vmem:[%s2 + $0x38] sm:$0xf]
  %v73 = vld [vmem:[%s2 + $0x3c] sm:$0xf]
  %v90 = vunpack.c.l.b16 %v58
  %v91 = vunpack.c.l.b16 %v59
  %v92 = vunpack.c.l.b16 %v60
  %v93 = vunpack.c.l.b16 %v61
  %v94 = vunpack.c.l.b16 %v62
  %v95 = vunpack.c.l.b16 %v63
  %v96 = vunpack.c.l.b16 %v64
  %v97 = vunpack.c.l.b16 %v65
  %v98 = vunpack.c.l.b16 %v66
  %v99 = vunpack.c.l.b16 %v67
  %v100 = vunpack.c.l.b16 %v68
  %v101 = vunpack.c.l.b16 %v69
  %v102 = vunpack.c.l.b16 %v70
  %v103 = vunpack.c.l.b16 %v71
  %v104 = vunpack.c.l.b16 %v72
  %v105 = vunpack.c.l.b16 %v73
  %v106 = vpack.c.b16 %v91, %v90
  %v107 = vpack.c.b16 %v93, %v92
  %v108 = vpack.c.b16 %v95, %v94
  %v109 = vpack.c.b16 %v97, %v96
  %v110 = vpack.c.b16 %v99, %v98
  %v111 = vpack.c.b16 %v101, %v100
  %v112 = vpack.c.b16 %v103, %v102
  %v113 = vpack.c.b16 %v105, %v104
  %122 = vmatprep.subr.bf16.mxu0 0
  %123 = vmatpush1.bf16.msra.mxu0 %v113
  %124 = vmatprep.subr.bf16.mxu0 0
  %125 = vmatpush1.bf16.msra.mxu0 %v112
  %126 = vmatprep.subr.bf16.mxu0 0
  %127 = vmatpush1.bf16.msra.mxu0 %v111
  %128 = vmatprep.subr.bf16.mxu0 0
  %129 = vmatpush1.bf16.msra.mxu0 %v110
  %130 = vmatprep.subr.bf16.mxu0 0
  %131 = vmatpush1.bf16.msra.mxu0 %v109
  %132 = vmatprep.subr.bf16.mxu0 0
  %133 = vmatpush1.bf16.msra.mxu0 %v108
  %134 = vmatprep.subr.bf16.mxu0 0
  %135 = vmatpush1.bf16.msra.mxu0 %v107
  %136 = vmatprep.subr.bf16.mxu0 0
  %137 = vmatpush1.bf16.msra.mxu0 %v106
  %138 = vmatprep.subr.bf16.mxu0 0
  %139 = vmatpush2.bf16.msra.mxu0 0
  %140 = vmatprep.subr.bf16.mxu0 0
  %141 = vmatpush2.bf16.msra.mxu0 0
  %142 = vmatprep.subr.bf16.mxu0 0
  %143 = vmatpush2.bf16.msra.mxu0 0
  %144 = vmatprep.subr.bf16.mxu0 0
  %145 = vmatpush2.bf16.msra.mxu0 0
  %146 = vmatprep.subr.bf16.mxu0 0
  %147 = vmatpush2.bf16.msra.mxu0 0
  %148 = vmatprep.subr.bf16.mxu0 0
  %149 = vmatpush2.bf16.msra.mxu0 0
  %150 = vmatprep.subr.bf16.mxu0 0
  %151 = vmatpush2.bf16.msra.mxu0 0
  %152 = vmatprep.subr.bf16.mxu0 0
  %153 = vmatpush2.bf16.msra.mxu0 0
  %154 = vmatprep.mubr.bf16.mxu0 0
  %155 = vmatmul.mubr.bf16.gmra.mxu0 %v34
  %v156 = vpop.f32.mrf.mxu0
  %v157 = vadd.f32 0.0, %v156
  %v158 = vpop.f32.mrf.mxu0
  %v159 = vpop.f32.mrf.mxu0
  %v160 = vadd.f32 0.0, %v159
  %v161 = vpop.f32.mrf.mxu0
  %162 = vmatprep.mubr.bf16.mxu0 0
  %163 = vmatmul.mubr.bf16.gmra.mxu0 %v35
  %v164 = vpop.f32.mrf.mxu0
  %v165 = vadd.f32 0.0, %v164
  %v166 = vpop.f32.mrf.mxu0
  %v167 = vpop.f32.mrf.mxu0
  %v168 = vadd.f32 0.0, %v167
  %v169 = vpop.f32.mrf.mxu0
  %170 = vmatprep.mubr.bf16.mxu0 0
  %171 = vmatmul.mubr.bf16.gmra.mxu0 %v36
  %v172 = vpop.f32.mrf.mxu0
  %v173 = vadd.f32 0.0, %v172
  %v174 = vpop.f32.mrf.mxu0
  %v175 = vpop.f32.mrf.mxu0
  %v176 = vadd.f32 0.0, %v175
  %v177 = vpop.f32.mrf.mxu0
  %178 = vmatprep.mubr.bf16.mxu0 0
  %179 = vmatmul.mubr.bf16.gmra.mxu0 %v37
  %v180 = vpop.f32.mrf.mxu0
  %v181 = vadd.f32 0.0, %v180
  %v182 = vpop.f32.mrf.mxu0
  %v183 = vpop.f32.mrf.mxu0
  %v184 = vadd.f32 0.0, %v183
  %v185 = vpop.f32.mrf.mxu0
  %186 = vmatprep.mubr.bf16.mxu0 0
  %187 = vmatmul.mubr.bf16.gmra.mxu0 %v38
  %v188 = vpop.f32.mrf.mxu0
  %v189 = vadd.f32 0.0, %v188
  %v190 = vpop.f32.mrf.mxu0
  %v191 = vpop.f32.mrf.mxu0
  %v192 = vadd.f32 0.0, %v191
  %v193 = vpop.f32.mrf.mxu0
  %194 = vmatprep.mubr.bf16.mxu0 0
  %195 = vmatmul.mubr.bf16.gmra.mxu0 %v39
  %v196 = vpop.f32.mrf.mxu0
  %v197 = vadd.f32 0.0, %v196
  %v198 = vpop.f32.mrf.mxu0
  %v199 = vpop.f32.mrf.mxu0
  %v200 = vadd.f32 0.0, %v199
  %v201 = vpop.f32.mrf.mxu0
  %202 = vmatprep.mubr.bf16.mxu0 0
  %203 = vmatmul.mubr.bf16.gmra.mxu0 %v40
  %v204 = vpop.f32.mrf.mxu0
  %v205 = vadd.f32 0.0, %v204
  %v206 = vpop.f32.mrf.mxu0
  %v207 = vpop.f32.mrf.mxu0
  %v208 = vadd.f32 0.0, %v207
  %v209 = vpop.f32.mrf.mxu0
  %210 = vmatprep.mubr.bf16.mxu0 0
  %211 = vmatmul.mubr.bf16.gmra.mxu0 %v41
  %v212 = vpop.f32.mrf.mxu0
  %v213 = vadd.f32 0.0, %v212
  %v214 = vpop.f32.mrf.mxu0
  %v215 = vpop.f32.mrf.mxu0
  %v216 = vadd.f32 0.0, %v215
  %v217 = vpop.f32.mrf.mxu0
  %218 = vdwg.mxu0
  %220 = vset.pattern.permute.xlu0 0
  %221 = vperm.xlu0 %220, %v42
  %v222 = vpop.permute.xlu0 %221
  %225 = vset.pattern.permute.xlu0 0
  %226 = vperm.xlu0 %225, %v43
  %v227 = vpop.permute.xlu0 %226
  %230 = vset.pattern.permute.xlu0 0
  %231 = vperm.xlu0 %230, %v44
  %v232 = vpop.permute.xlu0 %231
  %235 = vset.pattern.permute.xlu0 0
  %236 = vperm.xlu0 %235, %v45
  %v237 = vpop.permute.xlu0 %236
  %240 = vset.pattern.permute.xlu0 0
  %241 = vperm.xlu0 %240, %v46
  %v242 = vpop.permute.xlu0 %241
  %245 = vset.pattern.permute.xlu0 0
  %246 = vperm.xlu0 %245, %v47
  %v247 = vpop.permute.xlu0 %246
  %250 = vset.pattern.permute.xlu0 0
  %251 = vperm.xlu0 %250, %v48
  %v252 = vpop.permute.xlu0 %251
  %255 = vset.pattern.permute.xlu0 0
  %256 = vperm.xlu0 %255, %v49
  %v257 = vpop.permute.xlu0 %256
  %260 = vset.pattern.permute.xlu0 0
  %261 = vperm.xlu0 %260, %v50
  %v262 = vpop.permute.xlu0 %261
  %265 = vset.pattern.permute.xlu0 0
  %266 = vperm.xlu0 %265, %v51
  %v267 = vpop.permute.xlu0 %266
  %270 = vset.pattern.permute.xlu0 0
  %271 = vperm.xlu0 %270, %v52
  %v272 = vpop.permute.xlu0 %271
  %275 = vset.pattern.permute.xlu0 0
  %276 = vperm.xlu0 %275, %v53
  %v277 = vpop.permute.xlu0 %276
  %280 = vset.pattern.permute.xlu0 0
  %281 = vperm.xlu0 %280, %v54
  %v282 = vpop.permute.xlu0 %281
  %285 = vset.pattern.permute.xlu0 0
  %286 = vperm.xlu0 %285, %v55
  %v287 = vpop.permute.xlu0 %286
  %290 = vset.pattern.permute.xlu0 0
  %291 = vperm.xlu0 %290, %v56
  %v292 = vpop.permute.xlu0 %291
  %295 = vset.pattern.permute.xlu0 0
  %296 = vperm.xlu0 %295, %v57
  %v297 = vpop.permute.xlu0 %296
  %v299 = vmul.f32 %v157, %v222
  %v300 = vmul.f32 %v160, %v227
  %v301 = vmul.f32 %v165, %v232
  %v302 = vmul.f32 %v168, %v237
  %v303 = vmul.f32 %v173, %v242
  %v304 = vmul.f32 %v176, %v247
  %v305 = vmul.f32 %v181, %v252
  %v306 = vmul.f32 %v184, %v257
  %v307 = vmul.f32 %v189, %v262
  %v308 = vmul.f32 %v192, %v267
  %v309 = vmul.f32 %v197, %v272
  %v310 = vmul.f32 %v200, %v277
  %v311 = vmul.f32 %v205, %v282
  %v312 = vmul.f32 %v208, %v287
  %v313 = vmul.f32 %v213, %v292
  %v314 = vmul.f32 %v216, %v297
  %v315 = vld [vmem:[%s3] sm:$0xff]
  %v316 = vld [vmem:[%s3 + $0x8] sm:$0xff]
  %v317 = vld [vmem:[%s3 + $0x10] sm:$0xff]
  %v318 = vld [vmem:[%s3 + $0x18] sm:$0xff]
  %v319 = vld [vmem:[%s3 + $0x20] sm:$0xff]
  %v320 = vld [vmem:[%s3 + $0x28] sm:$0xff]
  %v321 = vld [vmem:[%s3 + $0x30] sm:$0xff]
  %v322 = vld [vmem:[%s3 + $0x38] sm:$0xff]
  %v323 = vld [vmem:[%s3 + $0x40] sm:$0xff]
  %v324 = vld [vmem:[%s3 + $0x48] sm:$0xff]
  %v325 = vld [vmem:[%s3 + $0x50] sm:$0xff]
  %v326 = vld [vmem:[%s3 + $0x58] sm:$0xff]
  %v327 = vld [vmem:[%s3 + $0x60] sm:$0xff]
  %v328 = vld [vmem:[%s3 + $0x68] sm:$0xff]
  %v329 = vld [vmem:[%s3 + $0x70] sm:$0xff]
  %v330 = vld [vmem:[%s3 + $0x78] sm:$0xff]
  %v331 = vadd.f32 %v299, %v315
  %v332 = vadd.f32 %v300, %v316
  %v333 = vadd.f32 %v301, %v317
  %v334 = vadd.f32 %v302, %v318
  %v335 = vadd.f32 %v303, %v319
  %v336 = vadd.f32 %v304, %v320
  %v337 = vadd.f32 %v305, %v321
  %v338 = vadd.f32 %v306, %v322
  %v339 = vadd.f32 %v307, %v323
  %v340 = vadd.f32 %v308, %v324
  %v341 = vadd.f32 %v309, %v325
  %v342 = vadd.f32 %v310, %v326
  %v343 = vadd.f32 %v311, %v327
  %v344 = vadd.f32 %v312, %v328
  %v345 = vadd.f32 %v313, %v329
  %v346 = vadd.f32 %v314, %v330
  %v347 = vmax.f32 %v331, 0.0
  %v348 = vmax.f32 %v332, 0.0
  %v349 = vmax.f32 %v333, 0.0
  %v350 = vmax.f32 %v334, 0.0
  %v351 = vmax.f32 %v335, 0.0
  %v352 = vmax.f32 %v336, 0.0
  %v353 = vmax.f32 %v337, 0.0
  %v354 = vmax.f32 %v338, 0.0
  %v355 = vmax.f32 %v339, 0.0
  %v356 = vmax.f32 %v340, 0.0
  %v357 = vmax.f32 %v341, 0.0
  %v358 = vmax.f32 %v342, 0.0
  %v359 = vmax.f32 %v343, 0.0
  %v360 = vmax.f32 %v344, 0.0
  %v361 = vmax.f32 %v345, 0.0
  %v362 = vmax.f32 %v346, 0.0
  %v363 = vpack.c.bf16 %v348, %v347
  %v364 = vpack.c.bf16 %v350, %v349
  %v365 = vpack.c.bf16 %v352, %v351
  %v366 = vpack.c.bf16 %v354, %v353
  %v367 = vpack.c.bf16 %v356, %v355
  %v368 = vpack.c.bf16 %v358, %v357
  %v369 = vpack.c.bf16 %v360, %v359
  %v370 = vpack.c.bf16 %v362, %v361
  %v371 = vld [vmem:[%s4] sm:$0xf]
  %v372 = vld [vmem:[%s4 + $0x4] sm:$0xf]
  %v373 = vld [vmem:[%s4 + $0x8] sm:$0xf]
  %v374 = vld [vmem:[%s4 + $0xc] sm:$0xf]
  %v375 = vld [vmem:[%s4 + $0x10] sm:$0xf]
  %v376 = vld [vmem:[%s4 + $0x14] sm:$0xf]
  %v377 = vld [vmem:[%s4 + $0x18] sm:$0xf]
  %v378 = vld [vmem:[%s4 + $0x1c] sm:$0xf]
  %v379 = vld [vmem:[%s5] sm:$0x1]
  %v381 = vlaneseq
  %v382 = vshrl.u32 %v381, 7
  %v383 = vsub.s32 0, %v382
  %v384 = vrot.slane %v379, %v383
  %v394 = vunpack.c.l.b16 %v371
  %v395 = vunpack.c.l.b16 %v372
  %v396 = vunpack.c.l.b16 %v373
  %v397 = vunpack.c.l.b16 %v374
  %v398 = vunpack.c.l.b16 %v375
  %v399 = vunpack.c.l.b16 %v376
  %v400 = vunpack.c.l.b16 %v377
  %v401 = vunpack.c.l.b16 %v378
  %v402 = vpack.c.b16 %v395, %v394
  %v403 = vpack.c.b16 %v397, %v396
  %v404 = vpack.c.b16 %v399, %v398
  %v405 = vpack.c.b16 %v401, %v400
  %vm410 = vcmask 523264
  %v412 = vsel %vm410, %v363, 0
  %v415 = vsel %vm410, %v364, 0
  %v418 = vsel %vm410, %v365, 0
  %v421 = vsel %vm410, %v366, 0
  %v424 = vsel %vm410, %v367, 0
  %v427 = vsel %vm410, %v368, 0
  %v430 = vsel %vm410, %v369, 0
  %v433 = vsel %vm410, %v370, 0
  %435 = vmatprep.subr.bf16.mxu0 0
  %436 = vmatpush1.bf16.msra.mxu0 0
  %437 = vmatprep.subr.bf16.mxu0 0
  %438 = vmatpush1.bf16.msra.mxu0 0
  %439 = vmatprep.subr.bf16.mxu0 0
  %440 = vmatpush1.bf16.msra.mxu0 0
  %441 = vmatprep.subr.bf16.mxu0 0
  %442 = vmatpush1.bf16.msra.mxu0 0
  %443 = vmatprep.subr.bf16.mxu0 0
  %444 = vmatpush1.bf16.msra.mxu0 %v405
  %445 = vmatprep.subr.bf16.mxu0 0
  %446 = vmatpush1.bf16.msra.mxu0 %v404
  %447 = vmatprep.subr.bf16.mxu0 0
  %448 = vmatpush1.bf16.msra.mxu0 %v403
  %449 = vmatprep.subr.bf16.mxu0 0
  %450 = vmatpush1.bf16.msra.mxu0 %v402
  %451 = vmatprep.subr.bf16.mxu0 0
  %452 = vmatpush2.bf16.msra.mxu0 0
  %453 = vmatprep.subr.bf16.mxu0 0
  %454 = vmatpush2.bf16.msra.mxu0 0
  %455 = vmatprep.subr.bf16.mxu0 0
  %456 = vmatpush2.bf16.msra.mxu0 0
  %457 = vmatprep.subr.bf16.mxu0 0
  %458 = vmatpush2.bf16.msra.mxu0 0
  %459 = vmatprep.subr.bf16.mxu0 0
  %460 = vmatpush2.bf16.msra.mxu0 0
  %461 = vmatprep.subr.bf16.mxu0 0
  %462 = vmatpush2.bf16.msra.mxu0 0
  %463 = vmatprep.subr.bf16.mxu0 0
  %464 = vmatpush2.bf16.msra.mxu0 0
  %465 = vmatprep.subr.bf16.mxu0 0
  %466 = vmatpush2.bf16.msra.mxu0 0
  %467 = vmatprep.mubr.bf16.mxu0 0
  %468 = vmatmul.mubr.bf16.gmra.mxu0 %v412
  %v469 = vpop.f32.mrf.mxu0
  %v470 = vadd.f32 %v384, %v469
  %v471 = vpop.f32.mrf.mxu0
  %v472 = vpop.f32.mrf.mxu0
  %v473 = vadd.f32 %v384, %v472
  %v474 = vpop.f32.mrf.mxu0
  %475 = vmatprep.mubr.bf16.mxu0 0
  %476 = vmatmul.mubr.bf16.gmra.mxu0 %v415
  %v477 = vpop.f32.mrf.mxu0
  %v478 = vadd.f32 %v384, %v477
  %v479 = vpop.f32.mrf.mxu0
  %v480 = vpop.f32.mrf.mxu0
  %v481 = vadd.f32 %v384, %v480
  %v482 = vpop.f32.mrf.mxu0
  %483 = vmatprep.mubr.bf16.mxu0 0
  %484 = vmatmul.mubr.bf16.gmra.mxu0 %v418
  %v485 = vpop.f32.mrf.mxu0
  %v486 = vadd.f32 %v384, %v485
  %v487 = vpop.f32.mrf.mxu0
  %v488 = vpop.f32.mrf.mxu0
  %v489 = vadd.f32 %v384, %v488
  %v490 = vpop.f32.mrf.mxu0
  %491 = vmatprep.mubr.bf16.mxu0 0
  %492 = vmatmul.mubr.bf16.gmra.mxu0 %v421
  %v493 = vpop.f32.mrf.mxu0
  %v494 = vadd.f32 %v384, %v493
  %v495 = vpop.f32.mrf.mxu0
  %v496 = vpop.f32.mrf.mxu0
  %v497 = vadd.f32 %v384, %v496
  %v498 = vpop.f32.mrf.mxu0
  %499 = vmatprep.mubr.bf16.mxu0 0
  %500 = vmatmul.mubr.bf16.gmra.mxu0 %v424
  %v501 = vpop.f32.mrf.mxu0
  %v502 = vadd.f32 %v384, %v501
  %v503 = vpop.f32.mrf.mxu0
  %v504 = vpop.f32.mrf.mxu0
  %v505 = vadd.f32 %v384, %v504
  %v506 = vpop.f32.mrf.mxu0
  %507 = vmatprep.mubr.bf16.mxu0 0
  %508 = vmatmul.mubr.bf16.gmra.mxu0 %v427
  %v509 = vpop.f32.mrf.mxu0
  %v510 = vadd.f32 %v384, %v509
  %v511 = vpop.f32.mrf.mxu0
  %v512 = vpop.f32.mrf.mxu0
  %v513 = vadd.f32 %v384, %v512
  %v514 = vpop.f32.mrf.mxu0
  %515 = vmatprep.mubr.bf16.mxu0 0
  %516 = vmatmul.mubr.bf16.gmra.mxu0 %v430
  %v517 = vpop.f32.mrf.mxu0
  %v518 = vadd.f32 %v384, %v517
  %v519 = vpop.f32.mrf.mxu0
  %v520 = vpop.f32.mrf.mxu0
  %v521 = vadd.f32 %v384, %v520
  %v522 = vpop.f32.mrf.mxu0
  %523 = vmatprep.mubr.bf16.mxu0 0
  %524 = vmatmul.mubr.bf16.gmra.mxu0 %v433
  %v525 = vpop.f32.mrf.mxu0
  %v526 = vadd.f32 %v384, %v525
  %v527 = vpop.f32.mrf.mxu0
  %v528 = vpop.f32.mrf.mxu0
  %v529 = vadd.f32 %v384, %v528
  %v530 = vpop.f32.mrf.mxu0
  %531 = vdwg.mxu0
  %v532 = vpack.c.bf16 %v473, %v470
  %v533 = vpack.c.bf16 %v481, %v478
  %v534 = vpack.c.bf16 %v489, %v486
  %v535 = vpack.c.bf16 %v497, %v494
  %v536 = vpack.c.bf16 %v505, %v502
  %v537 = vpack.c.bf16 %v513, %v510
  %v538 = vpack.c.bf16 %v521, %v518
  %v539 = vpack.c.bf16 %v529, %v526
  %540 = vmatprep.subr.bf16.mxu0 0
  %541 = vmatpush1.bf16.msra.mxu0 %v539
  %542 = vmatprep.subr.bf16.mxu0 0
  %543 = vmatpush1.bf16.msra.mxu0 %v538
  %544 = vmatprep.subr.bf16.mxu0 0
  %545 = vmatpush1.bf16.msra.mxu0 %v537
  %546 = vmatprep.subr.bf16.mxu0 0
  %547 = vmatpush1.bf16.msra.mxu0 %v536
  %548 = vmatprep.subr.bf16.mxu0 0
  %549 = vmatpush1.bf16.msra.mxu0 %v535
  %550 = vmatprep.subr.bf16.mxu0 0
  %551 = vmatpush1.bf16.msra.mxu0 %v534
  %552 = vmatprep.subr.bf16.mxu0 0
  %553 = vmatpush1.bf16.msra.mxu0 %v533
  %554 = vmatprep.subr.bf16.mxu0 0
  %555 = vmatpush1.bf16.msra.mxu0 %v532
  %556 = vmatprep.subr.bf16.mxu0 0
  %557 = vmatpush2.bf16.msra.mxu0 0
  %558 = vmatprep.subr.bf16.mxu0 0
  %559 = vmatpush2.bf16.msra.mxu0 0
  %560 = vmatprep.subr.bf16.mxu0 0
  %561 = vmatpush2.bf16.msra.mxu0 0
  %562 = vmatprep.subr.bf16.mxu0 0
  %563 = vmatpush2.bf16.msra.mxu0 0
  %564 = vmatprep.subr.bf16.mxu0 0
  %565 = vmatpush2.bf16.msra.mxu0 0
  %566 = vmatprep.subr.bf16.mxu0 0
  %567 = vmatpush2.bf16.msra.mxu0 0
  %568 = vmatprep.subr.bf16.mxu0 0
  %569 = vmatpush2.bf16.msra.mxu0 0
  %570 = vmatprep.subr.bf16.mxu0 0
  %571 = vmatpush2.bf16.msra.mxu0 0
  %572 = vmatprep.mubr.bf16.mxu0 0
  %573 = vmatmul.mubr.bf16.gmra.mxu0 %v34
  %v574 = vpop.f32.mrf.mxu0
  %v575 = vadd.f32 0.0, %v574
  %v576 = vpop.f32.mrf.mxu0
  %v577 = vpop.f32.mrf.mxu0
  %v578 = vadd.f32 0.0, %v577
  %v579 = vpop.f32.mrf.mxu0
  %580 = vmatprep.mubr.bf16.mxu0 0
  %581 = vmatmul.mubr.bf16.gmra.mxu0 %v35
  %v582 = vpop.f32.mrf.mxu0
  %v583 = vadd.f32 0.0, %v582
  %v584 = vpop.f32.mrf.mxu0
  %v585 = vpop.f32.mrf.mxu0
  %v586 = vadd.f32 0.0, %v585
  %v587 = vpop.f32.mrf.mxu0
  %588 = vmatprep.mubr.bf16.mxu0 0
  %589 = vmatmul.mubr.bf16.gmra.mxu0 %v36
  %v590 = vpop.f32.mrf.mxu0
  %v591 = vadd.f32 0.0, %v590
  %v592 = vpop.f32.mrf.mxu0
  %v593 = vpop.f32.mrf.mxu0
  %v594 = vadd.f32 0.0, %v593
  %v595 = vpop.f32.mrf.mxu0
  %596 = vmatprep.mubr.bf16.mxu0 0
  %597 = vmatmul.mubr.bf16.gmra.mxu0 %v37
  %v598 = vpop.f32.mrf.mxu0
  %v599 = vadd.f32 0.0, %v598
  %v600 = vpop.f32.mrf.mxu0
  %v601 = vpop.f32.mrf.mxu0
  %v602 = vadd.f32 0.0, %v601
  %v603 = vpop.f32.mrf.mxu0
  %604 = vmatprep.mubr.bf16.mxu0 0
  %605 = vmatmul.mubr.bf16.gmra.mxu0 %v38
  %v606 = vpop.f32.mrf.mxu0
  %v607 = vadd.f32 0.0, %v606
  %v608 = vpop.f32.mrf.mxu0
  %v609 = vpop.f32.mrf.mxu0
  %v610 = vadd.f32 0.0, %v609
  %v611 = vpop.f32.mrf.mxu0
  %612 = vmatprep.mubr.bf16.mxu0 0
  %613 = vmatmul.mubr.bf16.gmra.mxu0 %v39
  %v614 = vpop.f32.mrf.mxu0
  %v615 = vadd.f32 0.0, %v614
  %v616 = vpop.f32.mrf.mxu0
  %v617 = vpop.f32.mrf.mxu0
  %v618 = vadd.f32 0.0, %v617
  %v619 = vpop.f32.mrf.mxu0
  %620 = vmatprep.mubr.bf16.mxu0 0
  %621 = vmatmul.mubr.bf16.gmra.mxu0 %v40
  %v622 = vpop.f32.mrf.mxu0
  %v623 = vadd.f32 0.0, %v622
  %v624 = vpop.f32.mrf.mxu0
  %v625 = vpop.f32.mrf.mxu0
  %v626 = vadd.f32 0.0, %v625
  %v627 = vpop.f32.mrf.mxu0
  %628 = vmatprep.mubr.bf16.mxu0 0
  %629 = vmatmul.mubr.bf16.gmra.mxu0 %v41
  %v630 = vpop.f32.mrf.mxu0
  %v631 = vadd.f32 0.0, %v630
  %v632 = vpop.f32.mrf.mxu0
  %v633 = vpop.f32.mrf.mxu0
  %v634 = vadd.f32 0.0, %v633
  %v635 = vpop.f32.mrf.mxu0
  %636 = vdwg.mxu0
  %v637 = vmul.f32 %v575, %v222
  %v638 = vmul.f32 %v578, %v227
  %v639 = vmul.f32 %v583, %v232
  %v640 = vmul.f32 %v586, %v237
  %v641 = vmul.f32 %v591, %v242
  %v642 = vmul.f32 %v594, %v247
  %v643 = vmul.f32 %v599, %v252
  %v644 = vmul.f32 %v602, %v257
  %v645 = vmul.f32 %v607, %v262
  %v646 = vmul.f32 %v610, %v267
  %v647 = vmul.f32 %v615, %v272
  %v648 = vmul.f32 %v618, %v277
  %v649 = vmul.f32 %v623, %v282
  %v650 = vmul.f32 %v626, %v287
  %v651 = vmul.f32 %v631, %v292
  %v652 = vmul.f32 %v634, %v297
  %669 = vrot.lane.b32.xlu0 %v470, 64
  %v670 = vpop.permute.xlu0 %669
  %671 = vrot.lane.b32.xlu0 %v473, 64
  %v672 = vpop.permute.xlu0 %671
  %673 = vrot.lane.b32.xlu0 %v478, 64
  %v674 = vpop.permute.xlu0 %673
  %675 = vrot.lane.b32.xlu0 %v481, 64
  %v676 = vpop.permute.xlu0 %675
  %677 = vrot.lane.b32.xlu0 %v486, 64
  %v678 = vpop.permute.xlu0 %677
  %679 = vrot.lane.b32.xlu0 %v489, 64
  %v680 = vpop.permute.xlu0 %679
  %681 = vrot.lane.b32.xlu0 %v494, 64
  %v682 = vpop.permute.xlu0 %681
  %683 = vrot.lane.b32.xlu0 %v497, 64
  %v684 = vpop.permute.xlu0 %683
  %685 = vrot.lane.b32.xlu0 %v502, 64
  %v686 = vpop.permute.xlu0 %685
  %687 = vrot.lane.b32.xlu0 %v505, 64
  %v688 = vpop.permute.xlu0 %687
  %689 = vrot.lane.b32.xlu0 %v510, 64
  %v690 = vpop.permute.xlu0 %689
  %691 = vrot.lane.b32.xlu0 %v513, 64
  %v692 = vpop.permute.xlu0 %691
  %693 = vrot.lane.b32.xlu0 %v518, 64
  %v694 = vpop.permute.xlu0 %693
  %695 = vrot.lane.b32.xlu0 %v521, 64
  %v696 = vpop.permute.xlu0 %695
  %697 = vrot.lane.b32.xlu0 %v526, 64
  %v698 = vpop.permute.xlu0 %697
  %699 = vrot.lane.b32.xlu0 %v529, 64
  %v700 = vpop.permute.xlu0 %699
  %v717 = vadd.f32 %v637, %v670
  %v718 = vadd.f32 %v638, %v672
  %v719 = vadd.f32 %v639, %v674
  %v720 = vadd.f32 %v640, %v676
  %v721 = vadd.f32 %v641, %v678
  %v722 = vadd.f32 %v642, %v680
  %v723 = vadd.f32 %v643, %v682
  %v724 = vadd.f32 %v644, %v684
  %v725 = vadd.f32 %v645, %v686
  %v726 = vadd.f32 %v646, %v688
  %v727 = vadd.f32 %v647, %v690
  %v728 = vadd.f32 %v648, %v692
  %v729 = vadd.f32 %v649, %v694
  %v730 = vadd.f32 %v650, %v696
  %v731 = vadd.f32 %v651, %v698
  %v732 = vadd.f32 %v652, %v700
  %v733 = vmax.f32 %v717, 0.0
  %v734 = vmax.f32 %v718, 0.0
  %v735 = vmax.f32 %v719, 0.0
  %v736 = vmax.f32 %v720, 0.0
  %v737 = vmax.f32 %v721, 0.0
  %v738 = vmax.f32 %v722, 0.0
  %v739 = vmax.f32 %v723, 0.0
  %v740 = vmax.f32 %v724, 0.0
  %v741 = vmax.f32 %v725, 0.0
  %v742 = vmax.f32 %v726, 0.0
  %v743 = vmax.f32 %v727, 0.0
  %v744 = vmax.f32 %v728, 0.0
  %v745 = vmax.f32 %v729, 0.0
  %v746 = vmax.f32 %v730, 0.0
  %v747 = vmax.f32 %v731, 0.0
  %v748 = vmax.f32 %v732, 0.0
  %v749 = vld [vmem:[%s6] sm:$0xff]
  %v750 = vld [vmem:[%s6 + $0x8] sm:$0xff]
  %v751 = vld [vmem:[%s6 + $0x10] sm:$0xff]
  %v752 = vld [vmem:[%s6 + $0x18] sm:$0xff]
  %v753 = vld [vmem:[%s6 + $0x20] sm:$0xff]
  %v754 = vld [vmem:[%s6 + $0x28] sm:$0xff]
  %v755 = vld [vmem:[%s6 + $0x30] sm:$0xff]
  %v756 = vld [vmem:[%s6 + $0x38] sm:$0xff]
  %v757 = vld [vmem:[%s7] sm:$0x1]
  %v759 = vlaneseq
  %v760 = vshrl.u32 %v759, 7
  %v761 = vsub.s32 0, %v760
  %v762 = vrot.slane %v757, %v761
  %v765 = vsel %vm410, %v733, 0
  %v768 = vsel %vm410, %v734, 0
  %v771 = vsel %vm410, %v735, 0
  %v774 = vsel %vm410, %v736, 0
  %v777 = vsel %vm410, %v737, 0
  %v780 = vsel %vm410, %v738, 0
  %v783 = vsel %vm410, %v739, 0
  %v786 = vsel %vm410, %v740, 0
  %v789 = vsel %vm410, %v741, 0
  %v792 = vsel %vm410, %v742, 0
  %v795 = vsel %vm410, %v743, 0
  %v798 = vsel %vm410, %v744, 0
  %v801 = vsel %vm410, %v745, 0
  %v804 = vsel %vm410, %v746, 0
  %v807 = vsel %vm410, %v747, 0
  %v810 = vsel %vm410, %v748, 0
  %812 = vmatprep.subr.mxu0 0.0
  %813 = vmatpush1.msra.mxu0 0.0
  %814 = vmatprep.subr.mxu0 0.0
  %815 = vmatpush1.msra.mxu0 0.0
  %816 = vmatprep.subr.mxu0 0.0
  %817 = vmatpush1.msra.mxu0 0.0
  %818 = vmatprep.subr.mxu0 0.0
  %819 = vmatpush1.msra.mxu0 0.0
  %820 = vmatprep.subr.mxu0 0.0
  %821 = vmatpush1.msra.mxu0 0.0
  %822 = vmatprep.subr.mxu0 0.0
  %823 = vmatpush1.msra.mxu0 0.0
  %824 = vmatprep.subr.mxu0 0.0
  %825 = vmatpush1.msra.mxu0 0.0
  %826 = vmatprep.subr.mxu0 0.0
  %827 = vmatpush1.msra.mxu0 0.0
  %828 = vmatprep.subr.mxu0 0.0
  %829 = vmatpush1.msra.mxu0 %v756
  %830 = vmatprep.subr.mxu0 0.0
  %831 = vmatpush1.msra.mxu0 %v755
  %832 = vmatprep.subr.mxu0 0.0
  %833 = vmatpush1.msra.mxu0 %v754
  %834 = vmatprep.subr.mxu0 0.0
  %835 = vmatpush1.msra.mxu0 %v753
  %836 = vmatprep.subr.mxu0 0.0
  %837 = vmatpush1.msra.mxu0 %v752
  %838 = vmatprep.subr.mxu0 0.0
  %839 = vmatpush1.msra.mxu0 %v751
  %840 = vmatprep.subr.mxu0 0.0
  %841 = vmatpush1.msra.mxu0 %v750
  %842 = vmatprep.subr.mxu0 0.0
  %843 = vmatpush1.msra.mxu0 %v749
  %844 = vmatprep.subr.mxu0 0.0
  %845 = vmatpush2.msra.mxu0 0.0
  %846 = vmatprep.subr.mxu0 0.0
  %847 = vmatpush2.msra.mxu0 0.0
  %848 = vmatprep.subr.mxu0 0.0
  %849 = vmatpush2.msra.mxu0 0.0
  %850 = vmatprep.subr.mxu0 0.0
  %851 = vmatpush2.msra.mxu0 0.0
  %852 = vmatprep.subr.mxu0 0.0
  %853 = vmatpush2.msra.mxu0 0.0
  %854 = vmatprep.subr.mxu0 0.0
  %855 = vmatpush2.msra.mxu0 0.0
  %856 = vmatprep.subr.mxu0 0.0
  %857 = vmatpush2.msra.mxu0 0.0
  %858 = vmatprep.subr.mxu0 0.0
  %859 = vmatpush2.msra.mxu0 0.0
  %860 = vmatprep.subr.mxu0 0.0
  %861 = vmatpush2.msra.mxu0 0.0
  %862 = vmatprep.subr.mxu0 0.0
  %863 = vmatpush2.msra.mxu0 0.0
  %864 = vmatprep.subr.mxu0 0.0
  %865 = vmatpush2.msra.mxu0 0.0
  %866 = vmatprep.subr.mxu0 0.0
  %867 = vmatpush2.msra.mxu0 0.0
  %868 = vmatprep.subr.mxu0 0.0
  %869 = vmatpush2.msra.mxu0 0.0
  %870 = vmatprep.subr.mxu0 0.0
  %871 = vmatpush2.msra.mxu0 0.0
  %872 = vmatprep.subr.mxu0 0.0
  %873 = vmatpush2.msra.mxu0 0.0
  %874 = vmatprep.subr.mxu0 0.0
  %875 = vmatpush2.msra.mxu0 0.0
  %876 = vmatprep.mubr.f32.mxu0 0.0
  %877 = vmatmul.mubr.f32.gmra.mxu0 %v765
  %v878 = vpop.f32.mrf.mxu0
  %v879 = vadd.f32 %v762, %v878
  %v880 = vpop.f32.mrf.mxu0
  %881 = vmatprep.mubr.f32.mxu0 0.0
  %882 = vmatmul.mubr.f32.gmra.mxu0 %v768
  %v883 = vpop.f32.mrf.mxu0
  %v884 = vadd.f32 %v762, %v883
  %v885 = vpop.f32.mrf.mxu0
  %886 = vmatprep.mubr.f32.mxu0 0.0
  %887 = vmatmul.mubr.f32.gmra.mxu0 %v771
  %v888 = vpop.f32.mrf.mxu0
  %v889 = vadd.f32 %v762, %v888
  %v890 = vpop.f32.mrf.mxu0
  %891 = vmatprep.mubr.f32.mxu0 0.0
  %892 = vmatmul.mubr.f32.gmra.mxu0 %v774
  %v893 = vpop.f32.mrf.mxu0
  %v894 = vadd.f32 %v762, %v893
  %v895 = vpop.f32.mrf.mxu0
  %896 = vmatprep.mubr.f32.mxu0 0.0
  %897 = vmatmul.mubr.f32.gmra.mxu0 %v777
  %v898 = vpop.f32.mrf.mxu0
  %v899 = vadd.f32 %v762, %v898
  %v900 = vpop.f32.mrf.mxu0
  %901 = vmatprep.mubr.f32.mxu0 0.0
  %902 = vmatmul.mubr.f32.gmra.mxu0 %v780
  %v903 = vpop.f32.mrf.mxu0
  %v904 = vadd.f32 %v762, %v903
  %v905 = vpop.f32.mrf.mxu0
  %906 = vmatprep.mubr.f32.mxu0 0.0
  %907 = vmatmul.mubr.f32.gmra.mxu0 %v783
  %v908 = vpop.f32.mrf.mxu0
  %v909 = vadd.f32 %v762, %v908
  %v910 = vpop.f32.mrf.mxu0
  %911 = vmatprep.mubr.f32.mxu0 0.0
  %912 = vmatmul.mubr.f32.gmra.mxu0 %v786
  %v913 = vpop.f32.mrf.mxu0
  %v914 = vadd.f32 %v762, %v913
  %v915 = vpop.f32.mrf.mxu0
  %916 = vmatprep.mubr.f32.mxu0 0.0
  %917 = vmatmul.mubr.f32.gmra.mxu0 %v789
  %v918 = vpop.f32.mrf.mxu0
  %v919 = vadd.f32 %v762, %v918
  %v920 = vpop.f32.mrf.mxu0
  %921 = vmatprep.mubr.f32.mxu0 0.0
  %922 = vmatmul.mubr.f32.gmra.mxu0 %v792
  %v923 = vpop.f32.mrf.mxu0
  %v924 = vadd.f32 %v762, %v923
  %v925 = vpop.f32.mrf.mxu0
  %926 = vmatprep.mubr.f32.mxu0 0.0
  %927 = vmatmul.mubr.f32.gmra.mxu0 %v795
  %v928 = vpop.f32.mrf.mxu0
  %v929 = vadd.f32 %v762, %v928
  %v930 = vpop.f32.mrf.mxu0
  %931 = vmatprep.mubr.f32.mxu0 0.0
  %932 = vmatmul.mubr.f32.gmra.mxu0 %v798
  %v933 = vpop.f32.mrf.mxu0
  %v934 = vadd.f32 %v762, %v933
  %v935 = vpop.f32.mrf.mxu0
  %936 = vmatprep.mubr.f32.mxu0 0.0
  %937 = vmatmul.mubr.f32.gmra.mxu0 %v801
  %v938 = vpop.f32.mrf.mxu0
  %v939 = vadd.f32 %v762, %v938
  %v940 = vpop.f32.mrf.mxu0
  %941 = vmatprep.mubr.f32.mxu0 0.0
  %942 = vmatmul.mubr.f32.gmra.mxu0 %v804
  %v943 = vpop.f32.mrf.mxu0
  %v944 = vadd.f32 %v762, %v943
  %v945 = vpop.f32.mrf.mxu0
  %946 = vmatprep.mubr.f32.mxu0 0.0
  %947 = vmatmul.mubr.f32.gmra.mxu0 %v807
  %v948 = vpop.f32.mrf.mxu0
  %v949 = vadd.f32 %v762, %v948
  %v950 = vpop.f32.mrf.mxu0
  %951 = vmatprep.mubr.f32.mxu0 0.0
  %952 = vmatmul.mubr.f32.gmra.mxu0 %v810
  %v953 = vpop.f32.mrf.mxu0
  %v954 = vadd.f32 %v762, %v953
  %v955 = vpop.f32.mrf.mxu0
  %956 = vdwg.mxu0
  %v957 = vxor.u32 %v879, 2147483648
  %v958 = vxor.u32 %v884, 2147483648
  %v959 = vxor.u32 %v889, 2147483648
  %v960 = vxor.u32 %v894, 2147483648
  %v961 = vxor.u32 %v899, 2147483648
  %v962 = vxor.u32 %v904, 2147483648
  %v963 = vxor.u32 %v909, 2147483648
  %v964 = vxor.u32 %v914, 2147483648
  %v965 = vxor.u32 %v919, 2147483648
  %v966 = vxor.u32 %v924, 2147483648
  %v967 = vxor.u32 %v929, 2147483648
  %v968 = vxor.u32 %v934, 2147483648
  %v969 = vxor.u32 %v939, 2147483648
  %v970 = vxor.u32 %v944, 2147483648
  %v971 = vxor.u32 %v949, 2147483648
  %v972 = vxor.u32 %v954, 2147483648
  %v973 = vmul.f32 %v957, 1.442695
  %v974 = vpow.pop %v973
  %v975 = vmul.f32 %v958, 1.442695
  %v976 = vpow.pop %v975
  %v977 = vmul.f32 %v959, 1.442695
  %v978 = vpow.pop %v977
  %v979 = vmul.f32 %v960, 1.442695
  %v980 = vpow.pop %v979
  %v981 = vmul.f32 %v961, 1.442695
  %v982 = vpow.pop %v981
  %v983 = vmul.f32 %v962, 1.442695
  %v984 = vpow.pop %v983
  %v985 = vmul.f32 %v963, 1.442695
  %v986 = vpow.pop %v985
  %v987 = vmul.f32 %v964, 1.442695
  %v988 = vpow.pop %v987
  %v989 = vmul.f32 %v965, 1.442695
  %v990 = vpow.pop %v989
  %v991 = vmul.f32 %v966, 1.442695
  %v992 = vpow.pop %v991
  %v993 = vmul.f32 %v967, 1.442695
  %v994 = vpow.pop %v993
  %v995 = vmul.f32 %v968, 1.442695
  %v996 = vpow.pop %v995
  %v997 = vmul.f32 %v969, 1.442695
  %v998 = vpow.pop %v997
  %v999 = vmul.f32 %v970, 1.442695
  %v1000 = vpow.pop %v999
  %v1001 = vmul.f32 %v971, 1.442695
  %v1002 = vpow.pop %v1001
  %v1003 = vmul.f32 %v972, 1.442695
  %v1004 = vpow.pop %v1003
  %v1005 = vadd.f32 %v974, 1.0
  %v1006 = vadd.f32 %v976, 1.0
  %v1007 = vadd.f32 %v978, 1.0
  %v1008 = vadd.f32 %v980, 1.0
  %v1009 = vadd.f32 %v982, 1.0
  %v1010 = vadd.f32 %v984, 1.0
  %v1011 = vadd.f32 %v986, 1.0
  %v1012 = vadd.f32 %v988, 1.0
  %v1013 = vadd.f32 %v990, 1.0
  %v1014 = vadd.f32 %v992, 1.0
  %v1015 = vadd.f32 %v994, 1.0
  %v1016 = vadd.f32 %v996, 1.0
  %v1017 = vadd.f32 %v998, 1.0
  %v1018 = vadd.f32 %v1000, 1.0
  %v1019 = vadd.f32 %v1002, 1.0
  %v1020 = vadd.f32 %v1004, 1.0
  %v1021 = vrcp.pop %v1005
  %v1022 = vmul.f32 1.0, %v1021
  %v1023 = vrcp.pop %v1006
  %v1024 = vmul.f32 1.0, %v1023
  %v1025 = vrcp.pop %v1007
  %v1026 = vmul.f32 1.0, %v1025
  %v1027 = vrcp.pop %v1008
  %v1028 = vmul.f32 1.0, %v1027
  %v1029 = vrcp.pop %v1009
  %v1030 = vmul.f32 1.0, %v1029
  %v1031 = vrcp.pop %v1010
  %v1032 = vmul.f32 1.0, %v1031
  %v1033 = vrcp.pop %v1011
  %v1034 = vmul.f32 1.0, %v1033
  %v1035 = vrcp.pop %v1012
  %v1036 = vmul.f32 1.0, %v1035
  %v1037 = vrcp.pop %v1013
  %v1038 = vmul.f32 1.0, %v1037
  %v1039 = vrcp.pop %v1014
  %v1040 = vmul.f32 1.0, %v1039
  %v1041 = vrcp.pop %v1015
  %v1042 = vmul.f32 1.0, %v1041
  %v1043 = vrcp.pop %v1016
  %v1044 = vmul.f32 1.0, %v1043
  %v1045 = vrcp.pop %v1017
  %v1046 = vmul.f32 1.0, %v1045
  %v1047 = vrcp.pop %v1018
  %v1048 = vmul.f32 1.0, %v1047
  %v1049 = vrcp.pop %v1019
  %v1050 = vmul.f32 1.0, %v1049
  %v1051 = vrcp.pop %v1020
  %v1052 = vmul.f32 1.0, %v1051
  %1053 = vst [vmem:[%s8] sm:$0xff] %v1022
  %1054 = vst [vmem:[%s8 + $0x8] sm:$0xff] %v1024
  %1055 = vst [vmem:[%s8 + $0x10] sm:$0xff] %v1026
  %1056 = vst [vmem:[%s8 + $0x18] sm:$0xff] %v1028
  %1057 = vst [vmem:[%s8 + $0x20] sm:$0xff] %v1030
  %1058 = vst [vmem:[%s8 + $0x28] sm:$0xff] %v1032
  %1059 = vst [vmem:[%s8 + $0x30] sm:$0xff] %v1034
  %1060 = vst [vmem:[%s8 + $0x38] sm:$0xff] %v1036
  %1061 = vst [vmem:[%s8 + $0x40] sm:$0xff] %v1038
  %1062 = vst [vmem:[%s8 + $0x48] sm:$0xff] %v1040
  %1063 = vst [vmem:[%s8 + $0x50] sm:$0xff] %v1042
  %1064 = vst [vmem:[%s8 + $0x58] sm:$0xff] %v1044
  %1065 = vst [vmem:[%s8 + $0x60] sm:$0xff] %v1046
  %1066 = vst [vmem:[%s8 + $0x68] sm:$0xff] %v1048
  %1067 = vst [vmem:[%s8 + $0x70] sm:$0xff] %v1050
  %1068 = vst [vmem:[%s8 + $0x78] sm:$0xff] %v1052
  // Predicated region
  $region34: #{_lambda_.1} parent=0 // pred_check
    _
  $region35: #{_lambda_.1} parent=0 // pred_check_branch
    %1070 = sbr.rel (0) target = $region37
  $region36: #{_lambda_.1} parent=0 // pred_region
    _
  $region37: #{_lambda_.1} parent=0 // pred_fallthru
    _
  // Predicated region
  $region38: #{_lambda_.1} parent=0 // pred_check
    _
  $region39: #{_lambda_.1} parent=0 // pred_check_branch
    %1072 = sbr.rel (0) target = $region41
  $region40: #{_lambda_.1} parent=0 // pred_region
    _
  $region41: #{_lambda_.1} parent=0 // pred_fallthru
    _

</llo_original>
